<compile_context>
chip_gen: v5e
topology: v5e:2x2
jax: 0.10.0
libtpu: 0.0.40
codegen_flags: <defaults>
</compile_context>

<pallas_src>
import functools
import math

import jax
import jax.numpy as jnp
from jax import lax
from jax.experimental import pallas as pl
from jax.experimental.pallas import tpu as pltpu


# ----------------------------------------------------------------------------- helpers

def _round_up(x, m):
    return ((x + m - 1) // m) * m


@functools.lru_cache(maxsize=1)
def _vmem_cap_bytes():
    """~75% of physical per-core VMEM (generation-aware), min 32 MiB.

    v7x   : 64 MiB physical  -> ~48 MiB cap (headroom for compiler scratch)
    v5e/6e: 128 MiB physical -> ~96 MiB cap (large weight slabs stay resident)
    """
    phys = 64 << 20  # conservative fallback (v7x per-TensorCore VMEM)
    try:
        info = pltpu.get_tpu_info()
        phys = int(getattr(info, "vmem_capacity_bytes", phys)) or phys
    except Exception:
        pass
    return max(32 << 20, (phys * 3) // 4)


def _gelu(x, approximate):
    if approximate:
        # tanh approximation: transcendental goes to the otherwise-idle EUP slot.
        return jax.nn.gelu(x, approximate=True)
    # Exact erf-based GELU == torch.nn.GELU() default (VALU polynomial).
    return 0.5 * x * (1.0 + lax.erf(x * (1.0 / math.sqrt(2.0))))


# ----------------------------------------------------------------------------- kernels

def dense_block_resident_kernel(x_ref, w_ref, b_ref, o_ref, *,
                                layers_amount, mxu_dtype, approximate_gelu,
                                split_subtiles):
    """All L weight matrices resident in VMEM; one batch tile per grid step.

    x_ref: (bm, F)     input tile
    w_ref: (L, F, F)   pre-transposed weights (x @ w_ref[l] == x @ W_l.T)
    b_ref: (L, 1, F)   biases (f32)
    o_ref: (bm, F)     output tile

    When split_subtiles, the batch tile is processed as two independent
    sub-tiles so the MXU matmul of one can overlap the VPU/EUP activation of
    the other inside the (serially dependent) layer loop.
    """
    if split_subtiles:
        half = x_ref.shape[0] // 2
        parts = [x_ref[pl.ds(0, half), :].astype(jnp.float32),
                 x_ref[pl.ds(half, half), :].astype(jnp.float32)]
    else:
        parts = [x_ref[...].astype(jnp.float32)]

    def linear(h, l):
        # MXU matmul in mxu_dtype (bf16 default); accumulate + bias in f32.
        return (jnp.dot(h.astype(mxu_dtype), w_ref[l],
                        preferred_element_type=jnp.float32)
                + b_ref[l].astype(jnp.float32))

    def step(hs, l, first):
        outs = [linear(h, l) for h in hs]          # independent MXU chains
        if first:
            return [h + jnp.sin(o) for h, o in zip(hs, outs)]
        return [h + _gelu(o, approximate_gelu) for h, o in zip(hs, outs)]

    parts = step(parts, 0, True)                   # layer 0: Sine
    if layers_amount <= 8:
        for l in range(1, layers_amount):          # unrolled: LLO visibility
            parts = step(parts, l, False)
    else:
        def body(l, carry):                        # rolled: bounded live ranges
            return tuple(step(list(carry), l, False))
        parts = list(lax.fori_loop(1, layers_amount, body, tuple(parts)))

    if split_subtiles:
        half = x_ref.shape[0] // 2
        o_ref[pl.ds(0, half), :] = parts[0].astype(o_ref.dtype)
        o_ref[pl.ds(half, half), :] = parts[1].astype(o_ref.dtype)
    else:
        o_ref[...] = parts[0].astype(o_ref.dtype)


def dense_block_streaming_kernel(x_ref, w_ref, b_ref, o_ref, acc_ref, *,
                                 mxu_dtype, approximate_gelu):
    """Weights streamed one layer per grid step; grid = (batch_tiles, L).

    The evolving activation lives in `acc_ref` (VMEM scratch). x is consumed at
    l == 0; the output is written once at l == L-1 (accumulator pattern), so
    the per-layer weight DMA for l+1 overlaps layer l's matmul + activation.
    """
    l = pl.program_id(1)

    @pl.when(l == 0)
    def _init():
        acc_ref[...] = x_ref[...].astype(jnp.float32)

    h = acc_ref[...]
    out = (jnp.dot(h.astype(mxu_dtype), w_ref[0],
                   preferred_element_type=jnp.float32)
           + b_ref[0].astype(jnp.float32))

    @pl.when(l == 0)
    def _sine():
        acc_ref[...] = h + jnp.sin(out)

    @pl.when(l != 0)
    def _gelu_rest():
        acc_ref[...] = h + _gelu(out, approximate_gelu)

    @pl.when(l == pl.num_programs(1) - 1)
    def _write():
        o_ref[...] = acc_ref[...].astype(o_ref.dtype)


# ----------------------------------------------------------------------------- wrappers

def prepare_dense_block_params(weights, biases, *, mxu_dtype=jnp.bfloat16):
    """One-time parameter prep (do NOT call per forward pass).

    weights: (L, F, F) in PyTorch nn.Linear layout (out_features, in_features).
    biases:  (L, F).

    Default mxu_dtype=bfloat16: native MXU path on v6e/v7x and half the weight
    bytes (expected relative error vs torch f32 is ~1e-3 for PINN-scale
    activations). Pass mxu_dtype=float32 for a bit-accurate match to torch's
    f32 matmul. Bias stays f32 either way.
    """
    L, F, _ = weights.shape
    w_t = jnp.transpose(weights, (0, 2, 1)).astype(mxu_dtype)
    b = biases.reshape(L, 1, F).astype(jnp.float32)
    return w_t, b


def dense_block_forward(x, w_t, b, *, batch_tile=None, approximate_gelu=True,
                        stream_weights=None):
    """DenseBlock forward via Pallas.

    x:   (N, F)      activations (float32).
    w_t: (L, F, F)   pre-transposed weights from prepare_dense_block_params.
    b:   (L, 1, F)   biases (float32).

    approximate_gelu=True (tanh, EUP) is the performance default; pass False
    to match torch.nn.GELU()'s exact erf formulation bit-for-bit.
    """
    N, F = x.shape
    L = w_t.shape[0]
    assert w_t.shape == (L, F, F) and b.shape == (L, 1, F)
    assert F % 128 == 0, "features must be a multiple of 128 (TPU lane width)"

    out_dtype = x.dtype
    mxu_dtype = w_t.dtype
    w_isz = jnp.dtype(mxu_dtype).itemsize
    cap = _vmem_cap_bytes()

    # VMEM bytes for a resident weight slab + biases. Constant index_map means
    # they are DMA'd once per core, but the pipeline still allocates 2 buffers.
    resident_w_bytes = 2 * (L * F * F * w_isz + L * F * 4)

    def act_bytes(bm):               # 2x in + 2x out f32 tiles (double-buffered)
        return 4 * bm * F * 4

    if stream_weights is None:
        stream_weights = resident_w_bytes + act_bytes(128) > cap

    # --- batch tiling --------------------------------------------------------
    if batch_tile is None:
        # Streaming re-reads the whole weight slab once per batch tile -> go big.
        batch_tile = 1024 if stream_weights else 512
    batch_tile = max(8, _round_up(min(batch_tile, _round_up(N, 8)), 8))
    if not stream_weights:
        while batch_tile > 8 and resident_w_bytes + act_bytes(batch_tile) > cap:
            batch_tile = max(8, _round_up(batch_tile // 2, 8))

    n_pad = _round_up(N, batch_tile)
    x_in = jnp.pad(x, ((0, n_pad - N), (0, 0))) if n_pad != N else x
    grid_m = n_pad // batch_tile

    flops = 2 * n_pad * F * F * L
    transcendentals = n_pad * F * L

    if not stream_weights:
        split = batch_tile >= 16 and batch_tile % 16 == 0
        kernel = functools.partial(
            dense_block_resident_kernel,
            layers_amount=L, mxu_dtype=mxu_dtype,
            approximate_gelu=approximate_gelu, split_subtiles=split)

        budget = resident_w_bytes + act_bytes(batch_tile)
        vmem_limit = int(min(cap, max(32 << 20, budget + budget // 4 + (2 << 20))))
        cost = pl.CostEstimate(
            flops=flops, transcendentals=transcendentals,
            bytes_accessed=2 * n_pad * F * 4 + L * F * F * w_isz + L * F * 4)

        out_pad = pl.pallas_call(
            kernel,
            out_shape=jax.ShapeDtypeStruct((n_pad, F), out_dtype),
            grid_spec=pltpu.PrefetchScalarGridSpec(
                num_scalar_prefetch=0,
                grid=(grid_m,),
                in_specs=[
                    pl.BlockSpec((batch_tile, F), lambda i: (i, 0)),
                    pl.BlockSpec((L, F, F), lambda i: (0, 0, 0)),   # resident
                    pl.BlockSpec((L, 1, F), lambda i: (0, 0, 0)),   # resident
                ],
                out_specs=pl.BlockSpec((batch_tile, F), lambda i: (i, 0)),
            ),
            compiler_params=pltpu.CompilerParams(
                dimension_semantics=("parallel",),
                vmem_limit_bytes=vmem_limit),
            cost_estimate=cost,
        )(x_in, w_t, b)

    else:
        kernel = functools.partial(
            dense_block_streaming_kernel,
            mxu_dtype=mxu_dtype, approximate_gelu=approximate_gelu)

        budget = (2 * (F * F * w_isz + F * 4)   # per-layer weight+bias, 2 buffers
                  + act_bytes(batch_tile)       # in/out tiles
                  + batch_tile * F * 4)         # activation accumulator scratch
        vmem_limit = int(min(cap, max(32 << 20, budget + budget // 4 + (2 << 20))))
        cost = pl.CostEstimate(
            flops=flops, transcendentals=transcendentals,
            bytes_accessed=(2 * n_pad * F * 4
                            + grid_m * (L * F * F * w_isz + L * F * 4)))

        out_pad = pl.pallas_call(
            kernel,
            out_shape=jax.ShapeDtypeStruct((n_pad, F), out_dtype),
            grid_spec=pltpu.PrefetchScalarGridSpec(
                num_scalar_prefetch=0,
                grid=(grid_m, L),               # layer (sequential) axis last
                in_specs=[
                    pl.BlockSpec((batch_tile, F), lambda i, l: (i, 0)),
                    pl.BlockSpec((1, F, F), lambda i, l: (l, 0, 0)),
                    pl.BlockSpec((1, 1, F), lambda i, l: (l, 0, 0)),
                ],
                out_specs=pl.BlockSpec((batch_tile, F), lambda i, l: (i, 0)),
                scratch_shapes=[pltpu.VMEM((batch_tile, F), jnp.float32)],
            ),
            compiler_params=pltpu.CompilerParams(
                dimension_semantics=("parallel", "arbitrary"),
                vmem_limit_bytes=vmem_limit),
            cost_estimate=cost,
        )(x_in, w_t, b)

    return out_pad[:N] if n_pad != N else out_pad


def dense_block_reference(x, weights, biases, approximate_gelu=False):
    """Pure-JAX reference mirroring the PyTorch forward pass (f32)."""
    L = weights.shape[0]
    for l in range(L):
        out = x @ weights[l].T + biases[l]
        out = jnp.sin(out) if l == 0 else _gelu(out, approximate_gelu)
        x = x + out
    return x


# ----------------------------------------------------------------------------- demo

if __name__ == "__main__":
    layers_amount = 3
    features = 128
    batch = 8

    key = jax.random.PRNGKey(0)
    kx, kw, kb = jax.random.split(key, 3)

    x = jax.random.normal(kx, (batch, features), dtype=jnp.float32)

    # nn.Linear-shaped params: weight (out, in), bias (out,), PyTorch-style init.
    bound = 1.0 / math.sqrt(features)
    weights = jax.random.uniform(
        kw, (layers_amount, features, features),
        minval=-bound, maxval=bound, dtype=jnp.float32)
    biases = jax.random.uniform(
        kb, (layers_amount, features),
        minval=-bound, maxval=bound, dtype=jnp.float32)

    ref_exact = dense_block_reference(x, weights, biases, approximate_gelu=False)
    ref_tanh = dense_block_reference(x, weights, biases, approximate_gelu=True)

    # 1) Exact mode: f32 weights + erf GELU (bit-accuracy vs torch default).
    w_t32, b32 = prepare_dense_block_params(weights, biases, mxu_dtype=jnp.float32)
    out_exact = jax.block_until_ready(
        dense_block_forward(x, w_t32, b32, approximate_gelu=False))
    assert out_exact.shape == (batch, features)
    assert jnp.allclose(out_exact, ref_exact, atol=1e-4, rtol=1e-4)

    # 2) Performance defaults: bf16 MXU weights + tanh GELU (documented deviation
    #    from torch f32/erf; acceptable for PINN training-scale tolerances).
    w_t16, b16 = prepare_dense_block_params(weights, biases)        # bf16 default
    out_fast = jax.block_until_ready(dense_block_forward(x, w_t16, b16))
    assert jnp.allclose(out_fast, ref_tanh, atol=5e-2, rtol=5e-2)

    # 3) Weight-streaming variant (auto-selected when L*F*F won't fit VMEM cap).
    out_stream = jax.block_until_ready(
        dense_block_forward(x, w_t32, b32, approximate_gelu=False,
                            stream_weights=True))
    assert jnp.allclose(out_stream, ref_exact, atol=1e-4, rtol=1e-4)

    # 4) Ragged batch + multi-step grid (pipelined, megacore-shardable batch axis).
    x2 = jax.random.normal(jax.random.PRNGKey(1), (12, features), dtype=jnp.float32)
    ref2 = dense_block_reference(x2, weights, biases, approximate_gelu=False)
    out2 = jax.block_until_ready(
        dense_block_forward(x2, w_t32, b32, batch_tile=8, approximate_gelu=False))
    assert out2.shape == (12, features)
    assert jnp.allclose(out2, ref2, atol=1e-4, rtol=1e-4)

    # 5) Sub-tile interleaving path (batch tile split into 2 independent halves).
    x3 = jax.random.normal(jax.random.PRNGKey(2), (32, features), dtype=jnp.float32)
    ref3 = dense_block_reference(x3, weights, biases, approximate_gelu=False)
    out3 = jax.block_until_ready(
        dense_block_forward(x3, w_t32, b32, batch_tile=32, approximate_gelu=False))
    assert out3.shape == (32, features)
    assert jnp.allclose(out3, ref3, atol=1e-4, rtol=1e-4)

    print("KERNEL_OK")
</pallas_src>

<mosaic_0001>
module attributes {stable_mosaic.version = 11 : i64} {
  func.func @dense_block_resident_kernel(%arg0: i32, %arg1: memref<8x128xf32, #tpu.memory_space<vmem>>, %arg2: memref<3x128x128xf32, #tpu.memory_space<vmem>>, %arg3: memref<3x1x128xf32, #tpu.memory_space<vmem>>, %arg4: memref<8x128xf32, #tpu.memory_space<vmem>>) attributes {dimension_semantics = [#tpu.dimension_semantics<parallel>], iteration_bounds = array<i64: 1>, scalar_prefetch = 0 : i64, scratch_operands = 0 : i64, tpu.core_type = #tpu.core_type<tc>, window_params = [{transform_indices = @transform_0, window_bounds = array<i64: 8, 128>}, {pipeline_mode = #tpu.pipeline_mode<synchronous>, transform_indices = @transform_1, window_bounds = array<i64: 3, 128, 128>}, {pipeline_mode = #tpu.pipeline_mode<synchronous>, transform_indices = @transform_2, window_bounds = array<i64: 3, 1, 128>}, {transform_indices = @transform_3, window_bounds = array<i64: 8, 128>}]} {
    %c0 = arith.constant 0 : index
    %c0_0 = arith.constant 0 : index
    %0 = vector.load %arg1[%c0, %c0_0] : memref<8x128xf32, #tpu.memory_space<vmem>>, vector<8x128xf32>
    %c0_1 = arith.constant 0 : index
    %c0_2 = arith.constant 0 : index
    %c0_3 = arith.constant 0 : index
    %1 = vector.load %arg2[%c0_1, %c0_2, %c0_3] : memref<3x128x128xf32, #tpu.memory_space<vmem>>, vector<1x128x128xf32>
    %2 = vector.shape_cast %1 : vector<1x128x128xf32> to vector<128x128xf32>
    %cst = arith.constant dense<0.000000e+00> : vector<8x128xf32>
    %3 = tpu.matmul %0, %2, %cst {dimension_numbers = #tpu.dot_dimension_numbers<[1], [0], [0], [1], [0, 0, 1, 1], [], []>} : vector<8x128xf32>, vector<128x128xf32>, vector<8x128xf32> -> vector<8x128xf32>
    %c0_4 = arith.constant 0 : index
    %c0_5 = arith.constant 0 : index
    %c0_6 = arith.constant 0 : index
    %4 = vector.load %arg3[%c0_4, %c0_5, %c0_6] : memref<3x1x128xf32, #tpu.memory_space<vmem>>, vector<1x1x128xf32>
    %5 = vector.shape_cast %4 : vector<1x1x128xf32> to vector<1x128xf32>
    %6 = vector.broadcast %5 : vector<1x128xf32> to vector<8x128xf32>
    %7 = arith.addf %3, %6 : vector<8x128xf32>
    %8 = math.sin %7 : vector<8x128xf32>
    %9 = arith.addf %0, %8 : vector<8x128xf32>
    %c1 = arith.constant 1 : index
    %c0_7 = arith.constant 0 : index
    %c0_8 = arith.constant 0 : index
    %10 = vector.load %arg2[%c1, %c0_7, %c0_8] : memref<3x128x128xf32, #tpu.memory_space<vmem>>, vector<1x128x128xf32>
    %11 = vector.shape_cast %10 : vector<1x128x128xf32> to vector<128x128xf32>
    %cst_9 = arith.constant dense<0.000000e+00> : vector<8x128xf32>
    %12 = tpu.matmul %9, %11, %cst_9 {dimension_numbers = #tpu.dot_dimension_numbers<[1], [0], [0], [1], [0, 0, 1, 1], [], []>} : vector<8x128xf32>, vector<128x128xf32>, vector<8x128xf32> -> vector<8x128xf32>
    %c1_10 = arith.constant 1 : index
    %c0_11 = arith.constant 0 : index
    %c0_12 = arith.constant 0 : index
    %13 = vector.load %arg3[%c1_10, %c0_11, %c0_12] : memref<3x1x128xf32, #tpu.memory_space<vmem>>, vector<1x1x128xf32>
    %14 = vector.shape_cast %13 : vector<1x1x128xf32> to vector<1x128xf32>
    %15 = vector.broadcast %14 : vector<1x128xf32> to vector<8x128xf32>
    %16 = arith.addf %12, %15 : vector<8x128xf32>
    %cst_13 = arith.constant 5.000000e-01 : f32
    %17 = vector.broadcast %cst_13 : f32 to vector<8x128xf32>
    %18 = arith.mulf %17, %16 : vector<8x128xf32>
    %cst_14 = arith.constant 0.707106769 : f32
    %19 = vector.broadcast %cst_14 : f32 to vector<8x128xf32>
    %20 = arith.mulf %16, %19 : vector<8x128xf32>
    %21 = math.erf %20 : vector<8x128xf32>
    %cst_15 = arith.constant 1.000000e+00 : f32
    %22 = vector.broadcast %cst_15 : f32 to vector<8x128xf32>
    %23 = arith.addf %22, %21 : vector<8x128xf32>
    %24 = arith.mulf %18, %23 : vector<8x128xf32>
    %25 = arith.addf %9, %24 : vector<8x128xf32>
    %c2 = arith.constant 2 : index
    %c0_16 = arith.constant 0 : index
    %c0_17 = arith.constant 0 : index
    %26 = vector.load %arg2[%c2, %c0_16, %c0_17] : memref<3x128x128xf32, #tpu.memory_space<vmem>>, vector<1x128x128xf32>
    %27 = vector.shape_cast %26 : vector<1x128x128xf32> to vector<128x128xf32>
    %cst_18 = arith.constant dense<0.000000e+00> : vector<8x128xf32>
    %28 = tpu.matmul %25, %27, %cst_18 {dimension_numbers = #tpu.dot_dimension_numbers<[1], [0], [0], [1], [0, 0, 1, 1], [], []>} : vector<8x128xf32>, vector<128x128xf32>, vector<8x128xf32> -> vector<8x128xf32>
    %c2_19 = arith.constant 2 : index
    %c0_20 = arith.constant 0 : index
    %c0_21 = arith.constant 0 : index
    %29 = vector.load %arg3[%c2_19, %c0_20, %c0_21] : memref<3x1x128xf32, #tpu.memory_space<vmem>>, vector<1x1x128xf32>
    %30 = vector.shape_cast %29 : vector<1x1x128xf32> to vector<1x128xf32>
    %31 = vector.broadcast %30 : vector<1x128xf32> to vector<8x128xf32>
    %32 = arith.addf %28, %31 : vector<8x128xf32>
    %cst_22 = arith.constant 5.000000e-01 : f32
    %33 = vector.broadcast %cst_22 : f32 to vector<8x128xf32>
    %34 = arith.mulf %33, %32 : vector<8x128xf32>
    %cst_23 = arith.constant 0.707106769 : f32
    %35 = vector.broadcast %cst_23 : f32 to vector<8x128xf32>
    %36 = arith.mulf %32, %35 : vector<8x128xf32>
    %37 = math.erf %36 : vector<8x128xf32>
    %cst_24 = arith.constant 1.000000e+00 : f32
    %38 = vector.broadcast %cst_24 : f32 to vector<8x128xf32>
    %39 = arith.addf %38, %37 : vector<8x128xf32>
    %40 = arith.mulf %34, %39 : vector<8x128xf32>
    %41 = arith.addf %25, %40 : vector<8x128xf32>
    %c0_25 = arith.constant 0 : index
    %c0_26 = arith.constant 0 : index
    %42 = vector.load %arg4[%c0_25, %c0_26] : memref<8x128xf32, #tpu.memory_space<vmem>>, vector<8x128xf32>
    tpu.vector_store %arg4[%c0_25, %c0_26], %41 {strides = array<i32>} : memref<8x128xf32, #tpu.memory_space<vmem>>, vector<8x128xf32>,
    return
  }
  func.func @transform_0(%arg0: i32) -> (i32, i32) {
    %c0_i32 = arith.constant 0 : i32
    %c0_i32_0 = arith.constant 0 : i32
    return %arg0, %c0_i32 : i32, i32
  }
  func.func @transform_1(%arg0: i32) -> (i32, i32, i32) {
    %c0_i32 = arith.constant 0 : i32
    %c0_i32_0 = arith.constant 0 : i32
    %c0_i32_1 = arith.constant 0 : i32
    %c0_i32_2 = arith.constant 0 : i32
    return %c0_i32, %c0_i32_0, %c0_i32_1 : i32, i32, i32
  }
  func.func @transform_2(%arg0: i32) -> (i32, i32, i32) {
    %c0_i32 = arith.constant 0 : i32
    %c0_i32_0 = arith.constant 0 : i32
    %c0_i32_1 = arith.constant 0 : i32
    %c0_i32_2 = arith.constant 0 : i32
    return %c0_i32, %c0_i32_0, %c0_i32_1 : i32, i32, i32
  }
  func.func @transform_3(%arg0: i32) -> (i32, i32) {
    %c0_i32 = arith.constant 0 : i32
    %c0_i32_0 = arith.constant 0 : i32
    return %arg0, %c0_i32 : i32, i32
  }
}

</mosaic_0001>

<llo_original>
// kernel: tpu_custom_call.1
$region0: #{tpu_custom_call.1}
  #allocation0 [shape = 'u32[]', space=smem, size = 0x4, offset = 0x4, fixed_abs, tag = 'smem constant byte address 0x4 - core index']
  #allocation1 [shape = 'u32[72,128]{1,0:T(1,128)}', space=vmem, size = 0x9000, scoped, tag = 'internal scratch']
  %s0 = inlined_call_operand.hbm [shape: f32[8,128], index: 0, kind: input, shape index: {}]
  %s1 = inlined_call_operand.hbm [shape: f32[3,128,128], index: 1, kind: input, shape index: {}]
  %s2 = inlined_call_operand.hbm [shape: f32[3,1,128], index: 2, kind: input, shape index: {}]
  %s3 = inlined_call_operand.hbm [shape: f32[8,128], index: 3, kind: output, shape index: {}]
  %s4 = sld [smem:[#allocation0]]
  $region34: #{tpu_custom_call.1} parent=0
    _
  %s6 = ssub.s32 1, %s4
  %s7 = scalar_select 0, %s6, %s4
  $region1: #{tpu_custom_call.1} parent=0
    #allocation2 [shape = 'u8[4096]{0}', space=vmem, size = 0x1000, scoped, tag = 'input window, operand 0, single buffered']
    #allocation3 [shape = 's32[1]{0}', space=sflag, size = 0x4, scoped, tag = 'scoped memory for tpu_custom_call.1']
    #allocation4 [shape = 's32[1]{0}', space=sflag, size = 0x4, scoped, tag = 'scoped memory for tpu_custom_call.1']
    #allocation5 [shape = 'u8[196608]{0}', space=vmem, size = 0x30000, scoped, tag = 'input window, operand 1, single buffered']
    #allocation6 [shape = 's32[1]{0}', space=sflag, size = 0x4, scoped, tag = 'scoped memory for tpu_custom_call.1']
    #allocation7 [shape = 'u8[1536]{0}', space=vmem, size = 0x800, scoped, tag = 'input window, operand 2, single buffered']
    #allocation8 [shape = 'u8[4096]{0}', space=vmem, size = 0x1000, scoped, tag = 'output window, operand 0, single buffered']
    %8 = vsyncpa [#allocation3], 0
    %9 = vsyncpa [#allocation6], 0
    %10 = vsyncpa [#allocation4], 0
    // Predicated region
    $region2: #{tpu_custom_call.1} parent=1 // pred_check
      _
    $region3: #{tpu_custom_call.1} parent=1 // pred_check_branch
      %12 = sbr.rel (0) target = $region5
    $region4: #{tpu_custom_call.1} parent=1 // pred_region
      %14 = vsyncadd [#allocation3], 0
      %s16 = sshll.u32 %s0, 4
      %s17 = int_to_ptr.hbm [resolvable:$true] %s16
      %s18 = sshll.u32 [#allocation2], 4
      %s19 = int_to_ptr.vmem [resolvable:$true] %s18
      %21 = dma.hbm_to_vmem [thread:$0]  %s17, 128, %s19, [#allocation3]
    $region5: #{tpu_custom_call.1} parent=1 // pred_fallthru
      _
    // Predicated region
    $region6: #{tpu_custom_call.1} parent=1 // pred_check
      _
    $region7: #{tpu_custom_call.1} parent=1 // pred_check_branch
      %23 = sbr.rel (0) target = $region9
    $region8: #{tpu_custom_call.1} parent=1 // pred_region
      %25 = vsyncadd [#allocation6], 0
      %s26 = sshll.u32 %s1, 4
      %s27 = int_to_ptr.hbm [resolvable:$true] %s26
      %s28 = sshll.u32 [#allocation5], 4
      %s29 = int_to_ptr.vmem [resolvable:$true] %s28
      %34 = dma.hbm_to_vmem [thread:$0]  %s27, 6144, %s29, [#allocation6], 128, 128, 8
    $region9: #{tpu_custom_call.1} parent=1 // pred_fallthru
      _
    // Predicated region
    $region10: #{tpu_custom_call.1} parent=1 // pred_check
      _
    $region11: #{tpu_custom_call.1} parent=1 // pred_check_branch
      %36 = sbr.rel (0) target = $region13
    $region12: #{tpu_custom_call.1} parent=1 // pred_region
      %38 = vsyncadd [#allocation6], 0
      %s39 = sshll.u32 %s2, 4
      %s40 = int_to_ptr.hbm [resolvable:$true] %s39
      %s41 = sshll.u32 [#allocation7], 4
      %s42 = int_to_ptr.vmem [resolvable:$true] %s41
      %47 = dma.hbm_to_vmem [thread:$0]  %s40, 48, %s42, [#allocation6], 16, 16, 1
    $region13: #{tpu_custom_call.1} parent=1 // pred_fallthru
      _
    // Predicated region
    $region14: #{tpu_custom_call.1} parent=1 // pred_check
      _
    $region15: #{tpu_custom_call.1} parent=1 // pred_check_branch
      %49 = sbr.rel (0) target = $region17
    $region16: #{tpu_custom_call.1} parent=1 // pred_region
      %51 = dma.done [#allocation3], 128
    $region17: #{tpu_custom_call.1} parent=1 // pred_fallthru
      _
    // Predicated region
    $region18: #{tpu_custom_call.1} parent=1 // pred_check
      _
    $region19: #{tpu_custom_call.1} parent=1 // pred_check_branch
      %53 = sbr.rel (0) target = $region21
    $region20: #{tpu_custom_call.1} parent=1 // pred_region
      %55 = dma.done [#allocation6], 6144
    $region21: #{tpu_custom_call.1} parent=1 // pred_fallthru
      _
    // Predicated region
    $region22: #{tpu_custom_call.1} parent=1 // pred_check
      _
    $region23: #{tpu_custom_call.1} parent=1 // pred_check_branch
      %57 = sbr.rel (0) target = $region25
    $region24: #{tpu_custom_call.1} parent=1 // pred_region
      %59 = dma.done [#allocation6], 48
    $region25: #{tpu_custom_call.1} parent=1 // pred_fallthru
      _
    %v60 = vld [vmem:[#allocation2] sm:$0xff]
    %v61 = vld [vmem:[#allocation5] sm:$0xff]
    %v62 = vld [vmem:[#allocation5 + $0x8] sm:$0xff]
    %v63 = vld [vmem:[#allocation5 + $0x10] sm:$0xff]
    %v64 = vld [vmem:[#allocation5 + $0x18] sm:$0xff]
    %v65 = vld [vmem:[#allocation5 + $0x20] sm:$0xff]
    %v66 = vld [vmem:[#allocation5 + $0x28] sm:$0xff]
    %v67 = vld [vmem:[#allocation5 + $0x30] sm:$0xff]
    %v68 = vld [vmem:[#allocation5 + $0x38] sm:$0xff]
    %v69 = vld [vmem:[#allocation5 + $0x40] sm:$0xff]
    %v70 = vld [vmem:[#allocation5 + $0x48] sm:$0xff]
    %v71 = vld [vmem:[#allocation5 + $0x50] sm:$0xff]
    %v72 = vld [vmem:[#allocation5 + $0x58] sm:$0xff]
    %v73 = vld [vmem:[#allocation5 + $0x60] sm:$0xff]
    %v74 = vld [vmem:[#allocation5 + $0x68] sm:$0xff]
    %v75 = vld [vmem:[#allocation5 + $0x70] sm:$0xff]
    %v76 = vld [vmem:[#allocation5 + $0x78] sm:$0xff]
    %v77 = vld [vmem:[#allocation7] sm:$0x1]
    %v79 = vperm.slane %v77, 0
    %81 = vmatpush.msra.mxu0 %v76
    %82 = vmatpush.msra.mxu0 %v75
    %83 = vmatpush.msra.mxu0 %v74
    %84 = vmatpush.msra.mxu0 %v73
    %85 = vmatpush.msra.mxu0 %v72
    %86 = vmatpush.msra.mxu0 %v71
    %87 = vmatpush.msra.mxu0 %v70
    %88 = vmatpush.msra.mxu0 %v69
    %89 = vmatpush.msra.mxu0 %v68
    %90 = vmatpush.msra.mxu0 %v67
    %91 = vmatpush.msra.mxu0 %v66
    %92 = vmatpush.msra.mxu0 %v65
    %93 = vmatpush.msra.mxu0 %v64
    %94 = vmatpush.msra.mxu0 %v63
    %95 = vmatpush.msra.mxu0 %v62
    %96 = vmatpush.msra.mxu0 %v61
    %97 = vmatmul.f32.gmra.mxu0 %v60
    %v98 = vpop.f32.mrf.mxu0
    %v99 = vadd.f32 %v79, %v98
    %100 = vdwg.mxu0
    %v101 = vand.u32 2147483647, %v99
    %vm102 = vcmp.le.f32.partialorder %v101, 0.7853982
    %vm103 = vcmp.lt.s32.totalorder %v99, 0
    %v104 = vand.u32 %v99, 2139095040
    %v105 = vshrl.u32 %v104, 23
    %v106 = vsub.s32 %v105, 127
    %v107 = vand.u32 2147483647, %v99
    %v108 = vand.u32 %v107, 8388607
    %v109 = vor.u32 %v108, 8388608
    %v110 = vsub.s32 0, %v109
    %v111 = vadd.s32 %v106, 1
    %vm112 = vcmp.gt.s32.totalorder %v111, 0
    %v113 = vsel %vm112, %v111, 0
    %v114 = vshrl.u32 %v113, 5
    %v115 = vand.u32 %v113, 31
    %v116 = vsub.s32 32, %v115
    %v117 = vshrl.u32 683565275, %v116
    %v118 = vshll.u32 683565275, %v115
    %v119 = vshrl.u32 2475754826, %v116
    %v120 = vor.u32 %v118, %v119
    %v121 = vshll.u32 2475754826, %v115
    %v122 = vshrl.u32 2131351028, %v116
    %v123 = vor.u32 %v121, %v122
    %v124 = vshll.u32 2131351028, %v115
    %v125 = vshrl.u32 2102212464, %v116
    %v126 = vor.u32 %v124, %v125
    %v127 = vshll.u32 2102212464, %v115
    %v128 = vshrl.u32 920167782, %v116
    %v129 = vor.u32 %v127, %v128
    %v130 = vshll.u32 920167782, %v115
    %v131 = vshrl.u32 1326507024, %v116
    %v132 = vor.u32 %v130, %v131
    %vm133 = vcmp.lt.s32.totalorder %v114, 1
    %vm134 = vcmp.lt.s32.totalorder %v114, 2
    %vm135 = vcmp.lt.s32.totalorder %v114, 3
    %vm136 = vcmp.lt.s32.totalorder %v114, 4
    %v137 = vsel %vm133, %v117, %v120
    %v138 = vsel %vm136, %v126, 2102212464
    %v139 = vsel %vm135, %v123, %v138
    %v140 = vsel %vm134, %v137, %v139
    %v141 = vsel %vm133, %v120, %v123
    %v142 = vsel %vm136, %v129, 920167782
    %v143 = vsel %vm135, %v126, %v142
    %v144 = vsel %vm134, %v141, %v143
    %v145 = vsel %vm133, %v123, %v126
    %v146 = vsel %vm136, %v132, 1326507024
    %v147 = vsel %vm135, %v129, %v146
    %v148 = vsel %vm134, %v145, %v147
    %v149 = vshll.u32 %v109, 8
    %v150 = vand.u32 %v149, 65535
    %v151 = vshrl.u32 %v149, 16
    %v152 = vand.u32 %v148, 65535
    %v153 = vshrl.u32 %v148, 16
    %v154 = vmul.u32 %v150, %v152
    %v155 = vmul.u32 %v150, %v153
    %v156 = vmul.u32 %v151, %v152
    %v157 = vmul.u32 %v151, %v153
    %v158 = vshll.u32 %v155, 16
    %v159 = vshrl.u32 %v155, 16
    %v160 = vshll.u32 %v156, 16
    %v161 = vshrl.u32 %v156, 16
    %vm162 = vc.u32 %v154, %v158
    %v163 = vsel %vm162, 1, 0
    %v164 = vadd.s32 %v154, %v158
    %v165 = vadd.s32 %v157, %v163
    %vm166 = vc.u32 %v164, %v160
    %v167 = vsel %vm166, 1, 0
    %v168 = vadd.s32 %v164, %v160
    %v169 = vadd.s32 %v165, %v167
    %v170 = vadd.s32 %v169, %v159
    %v171 = vadd.s32 %v170, %v161
    %v172 = vand.u32 %v149, 65535
    %v173 = vshrl.u32 %v149, 16
    %v174 = vand.u32 %v144, 65535
    %v175 = vshrl.u32 %v144, 16
    %v176 = vmul.u32 %v172, %v174
    %v177 = vmul.u32 %v172, %v175
    %v178 = vmul.u32 %v173, %v174
    %v179 = vmul.u32 %v173, %v175
    %v180 = vshll.u32 %v177, 16
    %v181 = vshrl.u32 %v177, 16
    %v182 = vshll.u32 %v178, 16
    %v183 = vshrl.u32 %v178, 16
    %vm184 = vc.u32 %v176, %v180
    %v185 = vsel %vm184, 1, 0
    %v186 = vadd.s32 %v176, %v180
    %v187 = vadd.s32 %v179, %v185
    %vm188 = vc.u32 %v186, %v182
    %v189 = vsel %vm188, 1, 0
    %v190 = vadd.s32 %v186, %v182
    %v191 = vadd.s32 %v187, %v189
    %v192 = vadd.s32 %v191, %v181
    %v193 = vadd.s32 %v192, %v183
    %v194 = vmul.u32 %v149, %v140
    %v195 = vadd.s32 %v171, %v190
    %vm196 = vc.u32 %v171, %v190
    %v197 = vadd.s32 %v193, 1
    %v198 = vsel %vm196, %v197, %v193
    %v199 = vadd.s32 %v194, %v198
    %v200 = vadd.s32 %v199, 536870912
    %v201 = vshrl.u32 %v200, 30
    %v202 = vshll.u32 %v201, 30
    %v203 = vsub.s32 %v199, %v202
    %vm204 = vcmp.lt.s32.totalorder %v203, 0
    %v205 = vsub.s32 0, %v203
    %v206 = vsel %vm204, %v205, %v203
    %v207 = vclz %v206
    %v208 = vsub.s32 %v207, 2
    %vm209 = vcmp.gt.s32.totalorder 0, %v208
    %v210 = vsel %vm209, 0, %v208
    %v211 = vsub.s32 32, %v210
    %v212 = vshll.u32 %v203, %v210
    %v213 = vshrl.u32 %v195, %v211
    %v214 = vor.u32 %v212, %v213
    %v215 = vsub.s32 4294967266, %v210
    %v216 = vadd.s32 %v215, 127
    %v217 = vshll.u32 %v216, 23
    %v218 = vor.u32 4788187, %v217
    %v219 = vand.u32 2147483647, %v218
    %v221 = vcvt.s32.f32 %v214
    %v222 = vmul.f32 %v221, %v219
    %v223 = vxor.u32 %v222, 2147483648
    %v224 = vsel %vm103, %v223, %v222
    %v225 = vsub.s32 4, %v201
    %v226 = vsel %vm103, %v225, %v201
    %v227 = vsel %vm102, %v99, %v224
    %v228 = vsel %vm102, 0, %v226
    %v229 = vmul.f32 %v227, %v227
    %v230 = vmul.f32 %v229, -0.001358992
    %v231 = vadd.f32 %v230, 0.041655596
    %v232 = vmul.f32 %v229, %v231
    %v233 = vadd.f32 %v232, -0.4999988
    %v234 = vmul.f32 %v229, %v233
    %v235 = vadd.f32 1.0, %v234
    %v236 = vmul.f32 %v227, %v227
    %v237 = vmul.f32 %v236, -0.00019511016
    %v238 = vadd.f32 %v237, 0.008332121
    %v239 = vmul.f32 %v236, %v238
    %v240 = vadd.f32 %v239, -0.16666654
    %v241 = vmul.f32 %v236, %v240
    %v242 = vadd.f32 %v241, 1.0
    %v243 = vmul.f32 %v242, %v227
    %vm244 = vweird.f32 %v99
    %v245 = vadd.s32 %v228, 3
    %v246 = vand.u32 %v245, 3
    %vm247 = vcmp.lt.s32.totalorder %v246, 2
    %vm248 = vcmp.eq.s32.totalorder %v246, 0
    %v249 = vxor.u32 %v243, 2147483648
    %v250 = vsel %vm248, %v235, %v249
    %vm251 = vcmp.eq.s32.totalorder %v246, 2
    %v252 = vxor.u32 %v235, 2147483648
    %v253 = vsel %vm251, %v252, %v243
    %v254 = vsel %vm247, %v250, %v253
    %v255 = vsel %vm244, nan, %v254
    %v256 = vadd.f32 %v60, %v255
    %s257 = scalar_lea.vmem [#allocation5], 128
    %v258 = vld [vmem:[%s257] sm:$0xff]
    %v259 = vld [vmem:[%s257 + $0x8] sm:$0xff]
    %v260 = vld [vmem:[%s257 + $0x10] sm:$0xff]
    %v261 = vld [vmem:[%s257 + $0x18] sm:$0xff]
    %v262 = vld [vmem:[%s257 + $0x20] sm:$0xff]
    %v263 = vld [vmem:[%s257 + $0x28] sm:$0xff]
    %v264 = vld [vmem:[%s257 + $0x30] sm:$0xff]
    %v265 = vld [vmem:[%s257 + $0x38] sm:$0xff]
    %v266 = vld [vmem:[%s257 + $0x40] sm:$0xff]
    %v267 = vld [vmem:[%s257 + $0x48] sm:$0xff]
    %v268 = vld [vmem:[%s257 + $0x50] sm:$0xff]
    %v269 = vld [vmem:[%s257 + $0x58] sm:$0xff]
    %v270 = vld [vmem:[%s257 + $0x60] sm:$0xff]
    %v271 = vld [vmem:[%s257 + $0x68] sm:$0xff]
    %v272 = vld [vmem:[%s257 + $0x70] sm:$0xff]
    %v273 = vld [vmem:[%s257 + $0x78] sm:$0xff]
    %s274 = scalar_lea.vmem [#allocation7], 1
    %v275 = vld [vmem:[%s274] sm:$0x1]
    %v277 = vperm.slane %v275, 0
    %279 = vmatpush.msra.mxu0 %v273
    %280 = vmatpush.msra.mxu0 %v272
    %281 = vmatpush.msra.mxu0 %v271
    %282 = vmatpush.msra.mxu0 %v270
    %283 = vmatpush.msra.mxu0 %v269
    %284 = vmatpush.msra.mxu0 %v268
    %285 = vmatpush.msra.mxu0 %v267
    %286 = vmatpush.msra.mxu0 %v266
    %287 = vmatpush.msra.mxu0 %v265
    %288 = vmatpush.msra.mxu0 %v264
    %289 = vmatpush.msra.mxu0 %v263
    %290 = vmatpush.msra.mxu0 %v262
    %291 = vmatpush.msra.mxu0 %v261
    %292 = vmatpush.msra.mxu0 %v260
    %293 = vmatpush.msra.mxu0 %v259
    %294 = vmatpush.msra.mxu0 %v258
    %295 = vmatmul.f32.gmra.mxu0 %v256
    %v296 = vpop.f32.mrf.mxu0
    %v297 = vadd.f32 %v277, %v296
    %298 = vdwg.mxu0
    %v299 = vmul.f32 %v297, 0.5
    %v300 = vmul.f32 %v297, 0.70710677
    %v301 = vmul.f32 %v300, %v300
    %v302 = vmin.f32 16.0, %v301
    %v303 = vmul.f32 %v302, 2.1237322e-06
    %v304 = vadd.f32 %v303, 0.00028619796
    %v305 = vmul.f32 %v302, %v304
    %v306 = vadd.f32 %v305, 0.0036580483
    %v307 = vmul.f32 %v302, %v306
    %v308 = vadd.f32 %v307, 0.05243302
    %v309 = vmul.f32 %v302, %v308
    %v310 = vadd.f32 %v309, 0.18741608
    %v311 = vmul.f32 %v302, %v310
    %v312 = vadd.f32 %v311, 1.1283791
    %v313 = vmul.f32 %v300, %v312
    %v314 = vmul.f32 %v302, 3.8918573e-05
    %v315 = vadd.f32 %v314, 0.001143296
    %v316 = vmul.f32 %v302, %v315
    %v317 = vadd.f32 %v316, 0.014752088
    %v318 = vmul.f32 %v302, %v317
    %v319 = vadd.f32 %v318, 0.112945676
    %v320 = vmul.f32 %v302, %v319
    %v321 = vadd.f32 %v320, 0.4994258
    %v322 = vmul.f32 %v302, %v321
    %v323 = vadd.f32 %v322, 1.0
    %v324 = vrcp.pop %v323
    %v325 = vmul.f32 %v323, %v324
    %v326 = vsub.f32 1.0, %v325
    %v327 = vmul.f32 %v324, %v326
    %v328 = vadd.f32 %v324, %v327
    %vm329 = vweird.f32 %v323
    %vm330 = vweird.f32 %v324
    %vm331 = vmor %vm329, %vm330
    %v332 = vsel %vm331, %v324, %v328
    %v333 = vand.u32 2147483647, %v323
    %vm334 = vcmp.eq.f32.partialorder %v333, 8.507059e+37
    %v335 = vand.u32 %v323, 2147483648
    %v336 = vor.u32 1.1754944e-38, %v335
    %v337 = vsel %vm334, %v336, %v332
    %v338 = vmul.f32 %v313, %v337
    %v339 = vmin.f32 %v338, 1.0
    %v340 = vmax.f32 %v339, -1.0
    %v341 = vadd.f32 %v340, 1.0
    %v342 = vmul.f32 %v299, %v341
    %v343 = vadd.f32 %v256, %v342
    %s344 = scalar_lea.vmem [#allocation5], 256
    %v345 = vld [vmem:[%s344] sm:$0xff]
    %v346 = vld [vmem:[%s344 + $0x8] sm:$0xff]
    %v347 = vld [vmem:[%s344 + $0x10] sm:$0xff]
    %v348 = vld [vmem:[%s344 + $0x18] sm:$0xff]
    %v349 = vld [vmem:[%s344 + $0x20] sm:$0xff]
    %v350 = vld [vmem:[%s344 + $0x28] sm:$0xff]
    %v351 = vld [vmem:[%s344 + $0x30] sm:$0xff]
    %v352 = vld [vmem:[%s344 + $0x38] sm:$0xff]
    %v353 = vld [vmem:[%s344 + $0x40] sm:$0xff]
    %v354 = vld [vmem:[%s344 + $0x48] sm:$0xff]
    %v355 = vld [vmem:[%s344 + $0x50] sm:$0xff]
    %v356 = vld [vmem:[%s344 + $0x58] sm:$0xff]
    %v357 = vld [vmem:[%s344 + $0x60] sm:$0xff]
    %v358 = vld [vmem:[%s344 + $0x68] sm:$0xff]
    %v359 = vld [vmem:[%s344 + $0x70] sm:$0xff]
    %v360 = vld [vmem:[%s344 + $0x78] sm:$0xff]
    %s361 = scalar_lea.vmem [#allocation7], 2
    %v362 = vld [vmem:[%s361] sm:$0x1]
    %v364 = vperm.slane %v362, 0
    %366 = vmatpush.msra.mxu0 %v360
    %367 = vmatpush.msra.mxu0 %v359
    %368 = vmatpush.msra.mxu0 %v358
    %369 = vmatpush.msra.mxu0 %v357
    %370 = vmatpush.msra.mxu0 %v356
    %371 = vmatpush.msra.mxu0 %v355
    %372 = vmatpush.msra.mxu0 %v354
    %373 = vmatpush.msra.mxu0 %v353
    %374 = vmatpush.msra.mxu0 %v352
    %375 = vmatpush.msra.mxu0 %v351
    %376 = vmatpush.msra.mxu0 %v350
    %377 = vmatpush.msra.mxu0 %v349
    %378 = vmatpush.msra.mxu0 %v348
    %379 = vmatpush.msra.mxu0 %v347
    %380 = vmatpush.msra.mxu0 %v346
    %381 = vmatpush.msra.mxu0 %v345
    %382 = vmatmul.f32.gmra.mxu0 %v343
    %v383 = vpop.f32.mrf.mxu0
    %v384 = vadd.f32 %v364, %v383
    %385 = vdwg.mxu0
    %v386 = vmul.f32 %v384, 0.5
    %v387 = vmul.f32 %v384, 0.70710677
    %v388 = vmul.f32 %v387, %v387
    %v389 = vmin.f32 16.0, %v388
    %v390 = vmul.f32 %v389, 2.1237322e-06
    %v391 = vadd.f32 %v390, 0.00028619796
    %v392 = vmul.f32 %v389, %v391
    %v393 = vadd.f32 %v392, 0.0036580483
    %v394 = vmul.f32 %v389, %v393
    %v395 = vadd.f32 %v394, 0.05243302
    %v396 = vmul.f32 %v389, %v395
    %v397 = vadd.f32 %v396, 0.18741608
    %v398 = vmul.f32 %v389, %v397
    %v399 = vadd.f32 %v398, 1.1283791
    %v400 = vmul.f32 %v387, %v399
    %v401 = vmul.f32 %v389, 3.8918573e-05
    %v402 = vadd.f32 %v401, 0.001143296
    %v403 = vmul.f32 %v389, %v402
    %v404 = vadd.f32 %v403, 0.014752088
    %v405 = vmul.f32 %v389, %v404
    %v406 = vadd.f32 %v405, 0.112945676
    %v407 = vmul.f32 %v389, %v406
    %v408 = vadd.f32 %v407, 0.4994258
    %v409 = vmul.f32 %v389, %v408
    %v410 = vadd.f32 %v409, 1.0
    %v411 = vrcp.pop %v410
    %v412 = vmul.f32 %v410, %v411
    %v413 = vsub.f32 1.0, %v412
    %v414 = vmul.f32 %v411, %v413
    %v415 = vadd.f32 %v411, %v414
    %vm416 = vweird.f32 %v410
    %vm417 = vweird.f32 %v411
    %vm418 = vmor %vm416, %vm417
    %v419 = vsel %vm418, %v411, %v415
    %v420 = vand.u32 2147483647, %v410
    %vm421 = vcmp.eq.f32.partialorder %v420, 8.507059e+37
    %v422 = vand.u32 %v410, 2147483648
    %v423 = vor.u32 1.1754944e-38, %v422
    %v424 = vsel %vm421, %v423, %v419
    %v425 = vmul.f32 %v400, %v424
    %v426 = vmin.f32 %v425, 1.0
    %v427 = vmax.f32 %v426, -1.0
    %v428 = vadd.f32 %v427, 1.0
    %v429 = vmul.f32 %v386, %v428
    %v430 = vadd.f32 %v343, %v429
    %431 = vst [vmem:[#allocation8] sm:$0xff] %v430
    // Predicated region
    $region26: #{tpu_custom_call.1} parent=1 // pred_check
      _
    $region27: #{tpu_custom_call.1} parent=1 // pred_check_branch
      %433 = sbr.rel (0) target = $region29
    $region28: #{tpu_custom_call.1} parent=1 // pred_region
      %435 = vsyncadd [#allocation4], 0
      %s437 = sshll.u32 [#allocation8], 4
      %s438 = int_to_ptr.vmem [resolvable:$true] %s437
      %s439 = sshll.u32 %s3, 4
      %s440 = int_to_ptr.hbm [resolvable:$true] %s439
      %442 = dma.vmem_to_hbm [thread:$0]  %s438, 128, %s440, [#allocation4]
    $region29: #{tpu_custom_call.1} parent=1 // pred_fallthru
      _
    // Predicated region
    $region30: #{tpu_custom_call.1} parent=1 // pred_check
      _
    $region31: #{tpu_custom_call.1} parent=1 // pred_check_branch
      %444 = sbr.rel (0) target = $region33
    $region32: #{tpu_custom_call.1} parent=1 // pred_region
      %446 = dma.done [#allocation4], 128
    $region33: #{tpu_custom_call.1} parent=1 // pred_fallthru
      _
    %447 = vsyncpa [#allocation3], 1
    %448 = vsyncpa [#allocation6], 1
    %449 = vsyncpa [#allocation4], 1

</llo_original>
